<compile_context>
chip_gen: v7x
topology: tpu7x:2x2x1
jax: 0.10.0
libtpu: 0.0.40
codegen_flags: <defaults>
</compile_context>

<pallas_src>
import functools

import jax
import jax.numpy as jnp
from jax.experimental import pallas as pl
from jax.experimental.pallas import tpu as pltpu

LANE = 128


def _num_tensorcore_slots():
    """Conservative TensorCores-per-chip count: 2 on dual-TC chips, else 1."""
    try:
        info = pltpu.get_tpu_info()
        for attr in ("tensorcore_count", "num_tensorcores", "cores_per_chip"):
            v = getattr(info, attr, None)
            if isinstance(v, int) and v in (1, 2):
                return v
    except Exception:
        pass
    try:
        kind = jax.devices()[0].device_kind.lower()
        if "v7" in kind:
            return 2
    except Exception:
        pass
    return 1


def _masked_l1_kernel(pred_ref, tgt_ref, sum_ref, cnt_ref, *,
                      tile_rows, n_valid_rows, n_per_slot):
    c = pl.program_id(0)   # core-slot axis ("parallel")
    i = pl.program_id(1)   # tile axis within a slot ("arbitrary")

    # Zero this slot's accumulators at its first tile.
    @pl.when(i == 0)
    def _():
        sum_ref[...] = jnp.zeros_like(sum_ref)
        cnt_ref[...] = jnp.zeros_like(cnt_ref)

    # Cast per-tile in VMEM; inputs arrive in native dtype.
    t = tgt_ref[...].astype(jnp.float32)
    p = pred_ref[...].astype(jnp.float32)

    # First logical row covered by this (possibly phantom) tile.
    row0 = (c * n_per_slot + i) * tile_rows

    def accumulate(abs_diff, cnt):
        if tile_rows % 8 == 0:
            # Pure-VPU partial reduction: (tile_rows, 128) -> (8, 128).
            sum_ref[...] += abs_diff.reshape(tile_rows // 8, 8, LANE).sum(axis=0)
            cnt_ref[...] += cnt.reshape(tile_rows // 8, 8, LANE).sum(axis=0)
        else:
            # Only reachable for tiny full-extent blocks (rows < 8 / unaligned).
            sum_ref[0:1, :] = sum_ref[0:1, :] + abs_diff.sum(axis=0, keepdims=True)
            cnt_ref[0:1, :] = cnt_ref[0:1, :] + cnt.sum(axis=0, keepdims=True)

    # Fast path: tile fully inside the valid row range -> no row-index mask
    # (saves the iota + add + compare + and per element; dominant tile case).
    @pl.when(row0 + tile_rows <= n_valid_rows)
    def _():
        valid = t > 0.0
        accumulate(jnp.where(valid, jnp.abs(t - p), 0.0),
                   valid.astype(jnp.int32))

    # Slow path: partial last tile of this slot, or a phantom tile whose DMA
    # was clamped to the last real tile.  The row-index mask here is REQUIRED
    # so the clamped re-read block is never double-counted and the padded
    # region of a partial block contributes nothing.
    @pl.when(row0 + tile_rows > n_valid_rows)
    def _():
        row_idx = row0 + jax.lax.broadcasted_iota(jnp.int32, t.shape, 0)
        valid = jnp.logical_and(row_idx < n_valid_rows, t > 0.0)
        accumulate(jnp.where(valid, jnp.abs(t - p), 0.0),
                   valid.astype(jnp.int32))


def masked_l1_loss(pred, target, *, tile_rows=None):
    """Mean of |target - pred| over elements where target > 0 (NaN if none)."""
    assert pred.ndim == target.ndim, "inconsistent dimensions"
    assert pred.shape == target.shape, "inconsistent dimensions"

    total = pred.size
    pred_f = jnp.ravel(pred)        # free reshape, native dtype
    tgt_f = jnp.ravel(target)

    lane_rows = total // LANE       # full 128-wide rows handled by the kernel
    main = lane_rows * LANE
    tail = total - main             # < 128 leftover elements (JAX handles)

    total_sum = jnp.zeros((), jnp.float32)
    total_cnt = jnp.zeros((), jnp.float32)

    if lane_rows > 0:
        if tail == 0:
            p2d = pred_f.reshape(lane_rows, LANE)   # zero-copy view
            t2d = tgt_f.reshape(lane_rows, LANE)
        else:
            p2d = pred_f[:main].reshape(lane_rows, LANE)
            t2d = tgt_f[:main].reshape(lane_rows, LANE)

        if tile_rows is None:
            # dtype-aware: ~4 MiB per input block (above the roofline knee);
            # 8192 rows for f32, 16384 for bf16.  With double-buffering:
            # 2 inputs x 2 buffers x 4 MiB = 16 MiB VMEM.
            itemsize = jnp.dtype(pred.dtype).itemsize
            tile_rows = max(8, (4 * 1024 * 1024) // (LANE * itemsize))

        tr = min(tile_rows, lane_rows)
        n_tiles = pl.cdiv(lane_rows, tr)
        # One slot per TensorCore (1 on v5e/v6e, 2 on dual-TC chips), never
        # more slots than tiles (avoids phantom DMA + masked compute).
        n_slots = min(_num_tensorcore_slots(), n_tiles)
        n_per_slot = pl.cdiv(n_tiles, n_slots)

        def in_map(c, i):
            # Clamp so phantom tiles (fully masked in-kernel via row_idx)
            # never issue an out-of-bounds DMA.
            return (jnp.minimum(c * n_per_slot + i, n_tiles - 1), 0)

        kernel = functools.partial(
            _masked_l1_kernel,
            tile_rows=tr, n_valid_rows=lane_rows, n_per_slot=n_per_slot)

        sum_part, cnt_part = pl.pallas_call(
            kernel,
            out_shape=(
                jax.ShapeDtypeStruct((n_slots, 8, LANE), jnp.float32),
                jax.ShapeDtypeStruct((n_slots, 8, LANE), jnp.int32),
            ),
            grid_spec=pltpu.PrefetchScalarGridSpec(
                num_scalar_prefetch=0,
                grid=(n_slots, n_per_slot),
                in_specs=[
                    pl.BlockSpec((tr, LANE), in_map),
                    pl.BlockSpec((tr, LANE), in_map),
                ],
                out_specs=[
                    pl.BlockSpec((None, 8, LANE), lambda c, i: (c, 0, 0)),
                    pl.BlockSpec((None, 8, LANE), lambda c, i: (c, 0, 0)),
                ],
            ),
            compiler_params=pltpu.CompilerParams(
                dimension_semantics=("parallel", "arbitrary"),
                vmem_limit_bytes=32 * 1024 * 1024,
            ),
        )(p2d, t2d)

        total_sum = total_sum + jnp.sum(sum_part)
        # Per-cell int32 partials are exact; final reduce in f32 avoids int32
        # overflow of the grand total (<=1e-7 relative error on denominator).
        total_cnt = total_cnt + jnp.sum(cnt_part.astype(jnp.float32))

    if tail > 0:
        # Sub-128-element remainder: plain JAX (avoids padding/copying the
        # whole array just to reach a 128-aligned length).
        t_t = tgt_f[main:].astype(jnp.float32)
        p_t = pred_f[main:].astype(jnp.float32)
        vm = t_t > 0.0
        total_sum = total_sum + jnp.sum(jnp.where(vm, jnp.abs(t_t - p_t), 0.0))
        total_cnt = total_cnt + jnp.sum(vm.astype(jnp.float32))

    # NaN when no valid element, matching torch.mean of an empty tensor.
    return total_sum / total_cnt


if __name__ == "__main__":
    key = jax.random.PRNGKey(0)
    k1, k2, k3, k4 = jax.random.split(key, 4)

    def ref_loss(pred, target):
        t = target.astype(jnp.float32)
        p = pred.astype(jnp.float32)
        m = t > 0
        return jnp.sum(jnp.where(m, jnp.abs(t - p), 0.0)) / jnp.sum(m)

    # Main case: NCHW f32, 128-aligned flat size (zero-copy, single full tile,
    # fast no-mask path).
    pred = jax.random.normal(k1, (2, 4, 16, 16), dtype=jnp.float32)
    target = jax.random.normal(k2, (2, 4, 16, 16), dtype=jnp.float32)
    loss = masked_l1_loss(pred, target)
    jax.block_until_ready(loss)
    assert jnp.allclose(loss, ref_loss(pred, target), rtol=1e-6, atol=1e-6), (
        loss, ref_loss(pred, target))

    # Force multiple tiles (exercises accumulators across grid steps, the
    # slot split, and the fast/slow pl.when branches).
    loss2 = masked_l1_loss(pred, target, tile_rows=8)
    assert jnp.allclose(loss2, ref_loss(pred, target), rtol=1e-6, atol=1e-6)

    # Odd tile count: last tile partial -> masked slow path; any phantom tile
    # on a 2-slot chip is fully masked.
    loss2b = masked_l1_loss(pred, target, tile_rows=12)
    assert jnp.allclose(loss2b, ref_loss(pred, target), rtol=1e-6, atol=1e-6)

    # Ragged flat size: partial lane handled in JAX tail, full-extent block.
    pred3 = jax.random.normal(k3, (2, 3, 17, 19), dtype=jnp.float32)
    target3 = jax.random.normal(k4, (2, 3, 17, 19), dtype=jnp.float32)
    loss3 = masked_l1_loss(pred3, target3)
    assert jnp.allclose(loss3, ref_loss(pred3, target3), rtol=1e-6, atol=1e-6)

    # bf16 inputs stay bf16 through HBM->VMEM (cast in-kernel), dtype-aware
    # tile sizing.
    pred_bf = pred.astype(jnp.bfloat16)
    target_bf = target.astype(jnp.bfloat16)
    loss4 = masked_l1_loss(pred_bf, target_bf)
    assert jnp.allclose(loss4, ref_loss(pred_bf, target_bf),
                        rtol=1e-5, atol=1e-5)

    print("KERNEL_OK")
</pallas_src>

<mosaic_0001>
module attributes {stable_mosaic.version = 11 : i64} {
  func.func @_masked_l1_kernel(%arg0: i32, %arg1: i32, %arg2: memref<16x128xf32, #tpu.memory_space<vmem>>, %arg3: memref<16x128xf32, #tpu.memory_space<vmem>>, %arg4: memref<1x8x128xf32, #tpu.memory_space<vmem>>, %arg5: memref<1x8x128xi32, #tpu.memory_space<vmem>>) attributes {dimension_semantics = [#tpu.dimension_semantics<parallel>, #tpu.dimension_semantics<arbitrary>], iteration_bounds = array<i64: 1, 1>, scalar_prefetch = 0 : i64, scratch_operands = 0 : i64, tpu.core_type = #tpu.core_type<tc>, window_params = [{transform_indices = @transform_0, window_bounds = array<i64: 16, 128>}, {transform_indices = @transform_1, window_bounds = array<i64: 16, 128>}, {transform_indices = @transform_2, window_bounds = array<i64: 1, 8, 128>}, {transform_indices = @transform_3, window_bounds = array<i64: 1, 8, 128>}]} {
    %c0_i32 = arith.constant 0 : i32
    %0 = arith.cmpi eq, %arg1, %c0_i32 : i32
    %1 = arith.extui %0 : i1 to i32
    %c0_i32_0 = arith.constant 0 : i32
    %2 = arith.cmpi ne, %1, %c0_i32_0 : i32
    scf.if %2 {
      %cst = arith.constant 0.000000e+00 : f32
      %16 = vector.broadcast %cst : f32 to vector<8x128xf32>
      %c0_10 = arith.constant 0 : index
      %c0_11 = arith.constant 0 : index
      %c0_12 = arith.constant 0 : index
      %17 = vector.load %arg4[%c0_10, %c0_11, %c0_12] : memref<1x8x128xf32, #tpu.memory_space<vmem>>, vector<1x8x128xf32>
      %18 = vector.shape_cast %17 : vector<1x8x128xf32> to vector<8x128xf32>
      %19 = vector.shape_cast %16 : vector<8x128xf32> to vector<1x8x128xf32>
      tpu.vector_store %arg4[%c0_10, %c0_11, %c0_12], %19 {strides = array<i32>} : memref<1x8x128xf32, #tpu.memory_space<vmem>>, vector<1x8x128xf32>,
      %c0_i32_13 = arith.constant 0 : i32
      %20 = vector.broadcast %c0_i32_13 : i32 to vector<8x128xi32>
      %c0_14 = arith.constant 0 : index
      %c0_15 = arith.constant 0 : index
      %c0_16 = arith.constant 0 : index
      %21 = vector.load %arg5[%c0_14, %c0_15, %c0_16] : memref<1x8x128xi32, #tpu.memory_space<vmem>>, vector<1x8x128xi32>
      %22 = vector.shape_cast %21 : vector<1x8x128xi32> to vector<8x128xi32>
      %23 = vector.shape_cast %20 : vector<8x128xi32> to vector<1x8x128xi32>
      tpu.vector_store %arg5[%c0_14, %c0_15, %c0_16], %23 {strides = array<i32>} : memref<1x8x128xi32, #tpu.memory_space<vmem>>, vector<1x8x128xi32>,
    } else {
    }
    %c0 = arith.constant 0 : index
    %c0_1 = arith.constant 0 : index
    %3 = vector.load %arg3[%c0, %c0_1] : memref<16x128xf32, #tpu.memory_space<vmem>>, vector<16x128xf32>
    %c0_2 = arith.constant 0 : index
    %c0_3 = arith.constant 0 : index
    %4 = vector.load %arg2[%c0_2, %c0_3] : memref<16x128xf32, #tpu.memory_space<vmem>>, vector<16x128xf32>
    %c1_i32 = arith.constant 1 : i32
    %5 = arith.muli %arg0, %c1_i32 : i32
    %6 = arith.addi %5, %arg1 : i32
    %c16_i32 = arith.constant 16 : i32
    %7 = arith.muli %6, %c16_i32 : i32
    %c16_i32_4 = arith.constant 16 : i32
    %8 = arith.addi %7, %c16_i32_4 : i32
    %c16_i32_5 = arith.constant 16 : i32
    %9 = arith.cmpi sle, %8, %c16_i32_5 : i32
    %10 = arith.extui %9 : i1 to i32
    %c0_i32_6 = arith.constant 0 : i32
    %11 = arith.cmpi ne, %10, %c0_i32_6 : i32
    scf.if %11 {
      %cst = arith.constant 0.000000e+00 : f32
      %16 = vector.broadcast %cst : f32 to vector<16x128xf32>
      %17 = arith.cmpf ogt, %3, %16 : vector<16x128xf32>
      %18 = arith.subf %3, %4 : vector<16x128xf32>
      %19 = math.absf %18 : vector<16x128xf32>
      %cst_10 = arith.constant 0.000000e+00 : f32
      %20 = vector.broadcast %cst_10 : f32 to vector<16x128xf32>
      %21 = arith.select %17, %19, %20 : vector<16x128xi1>, vector<16x128xf32>
      %22 = arith.extui %17 : vector<16x128xi1> to vector<16x128xi32>
      %c0_11 = arith.constant 0 : index
      %c0_12 = arith.constant 0 : index
      %c0_13 = arith.constant 0 : index
      %23 = vector.load %arg4[%c0_11, %c0_12, %c0_13] : memref<1x8x128xf32, #tpu.memory_space<vmem>>, vector<1x8x128xf32>
      %24 = vector.shape_cast %23 : vector<1x8x128xf32> to vector<8x128xf32>
      %25 = vector.shape_cast %21 : vector<16x128xf32> to vector<2x8x128xf32>
      %cst_14 = arith.constant dense<0.000000e+00> : vector<8x128xf32>
      %26 = vector.multi_reduction <add>, %25, %cst_14 [0] : vector<2x8x128xf32> to vector<8x128xf32>
      %27 = arith.addf %24, %26 : vector<8x128xf32>
      %c0_15 = arith.constant 0 : index
      %c0_16 = arith.constant 0 : index
      %c0_17 = arith.constant 0 : index
      %28 = vector.load %arg4[%c0_15, %c0_16, %c0_17] : memref<1x8x128xf32, #tpu.memory_space<vmem>>, vector<1x8x128xf32>
      %29 = vector.shape_cast %28 : vector<1x8x128xf32> to vector<8x128xf32>
      %30 = vector.shape_cast %27 : vector<8x128xf32> to vector<1x8x128xf32>
      tpu.vector_store %arg4[%c0_15, %c0_16, %c0_17], %30 {strides = array<i32>} : memref<1x8x128xf32, #tpu.memory_space<vmem>>, vector<1x8x128xf32>,
      %c0_18 = arith.constant 0 : index
      %c0_19 = arith.constant 0 : index
      %c0_20 = arith.constant 0 : index
      %31 = vector.load %arg5[%c0_18, %c0_19, %c0_20] : memref<1x8x128xi32, #tpu.memory_space<vmem>>, vector<1x8x128xi32>
      %32 = vector.shape_cast %31 : vector<1x8x128xi32> to vector<8x128xi32>
      %33 = vector.shape_cast %22 : vector<16x128xi32> to vector<2x8x128xi32>
      %cst_21 = arith.constant dense<0> : vector<8x128xi32>
      %34 = vector.multi_reduction <add>, %33, %cst_21 [0] : vector<2x8x128xi32> to vector<8x128xi32>
      %35 = arith.addi %32, %34 : vector<8x128xi32>
      %c0_22 = arith.constant 0 : index
      %c0_23 = arith.constant 0 : index
      %c0_24 = arith.constant 0 : index
      %36 = vector.load %arg5[%c0_22, %c0_23, %c0_24] : memref<1x8x128xi32, #tpu.memory_space<vmem>>, vector<1x8x128xi32>
      %37 = vector.shape_cast %36 : vector<1x8x128xi32> to vector<8x128xi32>
      %38 = vector.shape_cast %35 : vector<8x128xi32> to vector<1x8x128xi32>
      tpu.vector_store %arg5[%c0_22, %c0_23, %c0_24], %38 {strides = array<i32>} : memref<1x8x128xi32, #tpu.memory_space<vmem>>, vector<1x8x128xi32>,
    } else {
    }
    %c16_i32_7 = arith.constant 16 : i32
    %12 = arith.addi %7, %c16_i32_7 : i32
    %c16_i32_8 = arith.constant 16 : i32
    %13 = arith.cmpi sgt, %12, %c16_i32_8 : i32
    %14 = arith.extui %13 : i1 to i32
    %c0_i32_9 = arith.constant 0 : i32
    %15 = arith.cmpi ne, %14, %c0_i32_9 : i32
    scf.if %15 {
      %16 = tpu.iota {dimensions = array<i32: 0>} : vector<16x128xi32>
      %17 = vector.broadcast %7 : i32 to vector<16x128xi32>
      %18 = arith.addi %17, %16 : vector<16x128xi32>
      %c16_i32_10 = arith.constant 16 : i32
      %19 = vector.broadcast %c16_i32_10 : i32 to vector<16x128xi32>
      %20 = arith.cmpi slt, %18, %19 : vector<16x128xi32>
      %cst = arith.constant 0.000000e+00 : f32
      %21 = vector.broadcast %cst : f32 to vector<16x128xf32>
      %22 = arith.cmpf ogt, %3, %21 : vector<16x128xf32>
      %23 = arith.andi %20, %22 : vector<16x128xi1>
      %24 = arith.subf %3, %4 : vector<16x128xf32>
      %25 = math.absf %24 : vector<16x128xf32>
      %cst_11 = arith.constant 0.000000e+00 : f32
      %26 = vector.broadcast %cst_11 : f32 to vector<16x128xf32>
      %27 = arith.select %23, %25, %26 : vector<16x128xi1>, vector<16x128xf32>
      %28 = arith.extui %23 : vector<16x128xi1> to vector<16x128xi32>
      %c0_12 = arith.constant 0 : index
      %c0_13 = arith.constant 0 : index
      %c0_14 = arith.constant 0 : index
      %29 = vector.load %arg4[%c0_12, %c0_13, %c0_14] : memref<1x8x128xf32, #tpu.memory_space<vmem>>, vector<1x8x128xf32>
      %30 = vector.shape_cast %29 : vector<1x8x128xf32> to vector<8x128xf32>
      %31 = vector.shape_cast %27 : vector<16x128xf32> to vector<2x8x128xf32>
      %cst_15 = arith.constant dense<0.000000e+00> : vector<8x128xf32>
      %32 = vector.multi_reduction <add>, %31, %cst_15 [0] : vector<2x8x128xf32> to vector<8x128xf32>
      %33 = arith.addf %30, %32 : vector<8x128xf32>
      %c0_16 = arith.constant 0 : index
      %c0_17 = arith.constant 0 : index
      %c0_18 = arith.constant 0 : index
      %34 = vector.load %arg4[%c0_16, %c0_17, %c0_18] : memref<1x8x128xf32, #tpu.memory_space<vmem>>, vector<1x8x128xf32>
      %35 = vector.shape_cast %34 : vector<1x8x128xf32> to vector<8x128xf32>
      %36 = vector.shape_cast %33 : vector<8x128xf32> to vector<1x8x128xf32>
      tpu.vector_store %arg4[%c0_16, %c0_17, %c0_18], %36 {strides = array<i32>} : memref<1x8x128xf32, #tpu.memory_space<vmem>>, vector<1x8x128xf32>,
      %c0_19 = arith.constant 0 : index
      %c0_20 = arith.constant 0 : index
      %c0_21 = arith.constant 0 : index
      %37 = vector.load %arg5[%c0_19, %c0_20, %c0_21] : memref<1x8x128xi32, #tpu.memory_space<vmem>>, vector<1x8x128xi32>
      %38 = vector.shape_cast %37 : vector<1x8x128xi32> to vector<8x128xi32>
      %39 = vector.shape_cast %28 : vector<16x128xi32> to vector<2x8x128xi32>
      %cst_22 = arith.constant dense<0> : vector<8x128xi32>
      %40 = vector.multi_reduction <add>, %39, %cst_22 [0] : vector<2x8x128xi32> to vector<8x128xi32>
      %41 = arith.addi %38, %40 : vector<8x128xi32>
      %c0_23 = arith.constant 0 : index
      %c0_24 = arith.constant 0 : index
      %c0_25 = arith.constant 0 : index
      %42 = vector.load %arg5[%c0_23, %c0_24, %c0_25] : memref<1x8x128xi32, #tpu.memory_space<vmem>>, vector<1x8x128xi32>
      %43 = vector.shape_cast %42 : vector<1x8x128xi32> to vector<8x128xi32>
      %44 = vector.shape_cast %41 : vector<8x128xi32> to vector<1x8x128xi32>
      tpu.vector_store %arg5[%c0_23, %c0_24, %c0_25], %44 {strides = array<i32>} : memref<1x8x128xi32, #tpu.memory_space<vmem>>, vector<1x8x128xi32>,
    } else {
    }
    return
  }
  func.func @transform_0(%arg0: i32, %arg1: i32) -> (i32, i32) {
    %c1_i32 = arith.constant 1 : i32
    %0 = arith.muli %arg0, %c1_i32 : i32
    %1 = arith.addi %0, %arg1 : i32
    %c0_i32 = arith.constant 0 : i32
    %2 = arith.minsi %1, %c0_i32 : i32
    %c0_i32_0 = arith.constant 0 : i32
    %c0_i32_1 = arith.constant 0 : i32
    return %2, %c0_i32_0 : i32, i32
  }
  func.func @transform_1(%arg0: i32, %arg1: i32) -> (i32, i32) {
    %c1_i32 = arith.constant 1 : i32
    %0 = arith.muli %arg0, %c1_i32 : i32
    %1 = arith.addi %0, %arg1 : i32
    %c0_i32 = arith.constant 0 : i32
    %2 = arith.minsi %1, %c0_i32 : i32
    %c0_i32_0 = arith.constant 0 : i32
    %c0_i32_1 = arith.constant 0 : i32
    return %2, %c0_i32_0 : i32, i32
  }
  func.func @transform_2(%arg0: i32, %arg1: i32) -> (i32, i32, i32) {
    %c0_i32 = arith.constant 0 : i32
    %c0_i32_0 = arith.constant 0 : i32
    %c0_i32_1 = arith.constant 0 : i32
    return %arg0, %c0_i32, %c0_i32_0 : i32, i32, i32
  }
  func.func @transform_3(%arg0: i32, %arg1: i32) -> (i32, i32, i32) {
    %c0_i32 = arith.constant 0 : i32
    %c0_i32_0 = arith.constant 0 : i32
    %c0_i32_1 = arith.constant 0 : i32
    return %arg0, %c0_i32, %c0_i32_0 : i32, i32, i32
  }
}

</mosaic_0001>

<llo_original>
// kernel: tpu_custom_call.1
$region0: #{tpu_custom_call.1}
  #allocation0 [shape = 'u32[]', space=smem, size = 0x4, offset = 0x4, fixed_abs, tag = 'smem constant byte address 0x4 - core index']
  #allocation1 [shape = 'u32[144,128]{1,0:T(1,128)}', space=vmem, size = 0x12000, scoped, tag = 'internal scratch']
  %s0 = inlined_call_operand.hbm [shape: f32[16,128], index: 0, kind: input, shape index: {}]
  %s1 = inlined_call_operand.hbm [shape: f32[16,128], index: 1, kind: input, shape index: {}]
  %s2 = inlined_call_operand.hbm [shape: f32[1,8,128], index: 2, kind: output, shape index: {0}]
  %s3 = inlined_call_operand.hbm [shape: s32[1,8,128], index: 3, kind: output, shape index: {1}]
  %4 = xla_tuple %s2, %s3
  %s5 = sld [smem:[#allocation0]]
  $region46: #{tpu_custom_call.1} parent=0
    _
  %s7 = ssub.s32 1, %s5
  %s8 = scalar_select 0, %s7, %s5
  $region1: #{tpu_custom_call.1} parent=0
    #allocation2 [shape = 'u8[8192]{0}', space=vmem, size = 0x2000, scoped, tag = 'input window, operand 0, single buffered']
    #allocation3 [shape = 's32[1]{0}', space=sflag, size = 0x4, scoped, tag = 'scoped memory for tpu_custom_call.1']
    #allocation4 [shape = 's32[1]{0}', space=sflag, size = 0x4, scoped, tag = 'scoped memory for tpu_custom_call.1']
    #allocation5 [shape = 'u8[8192]{0}', space=vmem, size = 0x2000, scoped, tag = 'input window, operand 1, single buffered']
    #allocation6 [shape = 's32[1]{0}', space=sflag, size = 0x4, scoped, tag = 'scoped memory for tpu_custom_call.1']
    #allocation7 [shape = 'u8[4096]{0}', space=vmem, size = 0x1000, scoped, tag = 'output window, operand 0, single buffered']
    #allocation8 [shape = 'u8[4096]{0}', space=vmem, size = 0x1000, scoped, tag = 'output window, operand 1, single buffered']
    #allocation9 [shape = 's32[1]{0}', space=sflag, size = 0x4, scoped, tag = 'scoped memory for tpu_custom_call.1']
    %9 = vsyncpa [#allocation3], 0
    %10 = vsyncpa [#allocation6], 0
    %11 = vsyncpa [#allocation4], 0
    %12 = vsyncpa [#allocation9], 0
    // Predicated region
    $region2: #{tpu_custom_call.1} parent=1 // pred_check
      _
    $region3: #{tpu_custom_call.1} parent=1 // pred_check_branch
      %14 = sbr.rel (0) target = $region5
    $region4: #{tpu_custom_call.1} parent=1 // pred_region
      %s15 = sadd.s32 0, 0
      %p16 = scmp.lt.s32.totalorder %s15, 0
      %s17 = scalar_select %p16, %s15, 0
      %s18 = smul.u32 2, %s17
      %s20 = ssub.s32 256, 256
      %21 = vsyncadd [#allocation3], %s20
      %s22 = smul.addr %s18, 128
      %s23 = scalar_lea.hbm %s0, %s22
      %s24 = sshll.u32 [#allocation2], 4
      %s25 = int_to_ptr.vmem [resolvable:$true] %s24
      %30 = dma.hbm_to_vmem [thread:$0]  %s23, 256, %s25, [#allocation3], 128, 128, 8
    $region5: #{tpu_custom_call.1} parent=1 // pred_fallthru
      _
    // Predicated region
    $region6: #{tpu_custom_call.1} parent=1 // pred_check
      _
    $region7: #{tpu_custom_call.1} parent=1 // pred_check_branch
      %32 = sbr.rel (0) target = $region9
    $region8: #{tpu_custom_call.1} parent=1 // pred_region
      %s33 = sadd.s32 0, 0
      %p34 = scmp.lt.s32.totalorder %s33, 0
      %s35 = scalar_select %p34, %s33, 0
      %s36 = smul.u32 2, %s35
      %s38 = ssub.s32 256, 256
      %39 = vsyncadd [#allocation6], %s38
      %s40 = smul.addr %s36, 128
      %s41 = scalar_lea.hbm %s1, %s40
      %s42 = sshll.u32 [#allocation5], 4
      %s43 = int_to_ptr.vmem [resolvable:$true] %s42
      %48 = dma.hbm_to_vmem [thread:$0]  %s41, 256, %s43, [#allocation6], 128, 128, 8
    $region9: #{tpu_custom_call.1} parent=1 // pred_fallthru
      _
    // Predicated region
    $region10: #{tpu_custom_call.1} parent=1 // pred_check
      _
    $region11: #{tpu_custom_call.1} parent=1 // pred_check_branch
      %50 = sbr.rel (0) target = $region13
    $region12: #{tpu_custom_call.1} parent=1 // pred_region
      %51 = dma.done [#allocation3], 256
    $region13: #{tpu_custom_call.1} parent=1 // pred_fallthru
      _
    // Predicated region
    $region14: #{tpu_custom_call.1} parent=1 // pred_check
      _
    $region15: #{tpu_custom_call.1} parent=1 // pred_check_branch
      %53 = sbr.rel (0) target = $region17
    $region16: #{tpu_custom_call.1} parent=1 // pred_region
      %54 = dma.done [#allocation6], 256
    $region17: #{tpu_custom_call.1} parent=1 // pred_fallthru
      _
    %s55 = sadd.s32 0, 0
    %p56 = scmp.lt.s32.totalorder %s55, 0
    %s57 = scalar_select %p56, %s55, 0
    %s58 = smul.u32 2, %s57
    %s59 = sadd.s32 0, 0
    %p60 = scmp.lt.s32.totalorder %s59, 0
    %s61 = scalar_select %p60, %s59, 0
    %s62 = smul.u32 2, %s61
    %p63 = scmp.eq.s32.totalorder 0, 0
    // Predicated region
    $region18: #{tpu_custom_call.1} parent=1 // pred_check
      %p64 = pneg %p63
    $region19: #{tpu_custom_call.1} parent=1 // pred_check_branch
      %66 = sbr.rel (%p64) target = $region21
    $region20: #{tpu_custom_call.1} parent=1 // pred_region
      %67 = vst [vmem:[#allocation7] sm:$0xff] 0.0
      %68 = vst [vmem:[#allocation8] sm:$0xff] 0
    $region21: #{tpu_custom_call.1} parent=1 // pred_fallthru
      _
    %v69 = vld [vmem:[#allocation5] sm:$0xff]
    %v70 = vld [vmem:[#allocation5 + $0x8] sm:$0xff]
    %v71 = vld [vmem:[#allocation2] sm:$0xff]
    %v72 = vld [vmem:[#allocation2 + $0x8] sm:$0xff]
    %s73 = sadd.s32 0, 0
    %s74 = smul.u32 %s73, 16
    %s75 = sadd.s32 %s74, 16
    %p76 = scmp.le.s32.totalorder %s75, 16
    // Predicated region
    $region22: #{tpu_custom_call.1} parent=1 // pred_check
      %p77 = pneg %p76
    $region23: #{tpu_custom_call.1} parent=1 // pred_check_branch
      %79 = sbr.rel (%p77) target = $region25
    $region24: #{tpu_custom_call.1} parent=1 // pred_region
      %vm80 = vcmp.gt.f32.partialorder %v69, 0.0
      %vm81 = vcmp.gt.f32.partialorder %v70, 0.0
      %v82 = vsub.f32 %v69, %v71
      %v83 = vsub.f32 %v70, %v72
      %v84 = vand.u32 2147483647, %v82
      %v85 = vand.u32 2147483647, %v83
      %v86 = vsel %vm80, %v84, 0.0
      %v87 = vsel %vm81, %v85, 0.0
      %v88 = vsel %vm80, 1, 0
      %v89 = vsel %vm81, 1, 0
      %v90 = vld [vmem:[#allocation7] sm:$0xff]
      %v91 = vadd.f32 %v86, %v87
      %v92 = vadd.f32 %v90, %v91
      %93 = vst [vmem:[#allocation7] sm:$0xff] %v92
      %v94 = vld [vmem:[#allocation8] sm:$0xff]
      %v95 = vadd.s32 %v88, %v89
      %v96 = vadd.s32 %v94, %v95
      %97 = vst [vmem:[#allocation8] sm:$0xff] %v96
    $region25: #{tpu_custom_call.1} parent=1 // pred_fallthru
      _
    %p98 = scmp.gt.s32.totalorder %s75, 16
    // Predicated region
    $region26: #{tpu_custom_call.1} parent=1 // pred_check
      %p99 = pneg %p98
    $region27: #{tpu_custom_call.1} parent=1 // pred_check_branch
      %101 = sbr.rel (%p99) target = $region29
    $region28: #{tpu_custom_call.1} parent=1 // pred_region
      %v102 = vlaneseq
      %v103 = vshrl.u32 %v102, 7
      %v104 = vadd.s32 %v103, 8
      %v105 = vstv %s74
      %v106 = vadd.s32 %v105, %v103
      %v107 = vadd.s32 %v105, %v104
      %vm108 = vcmp.lt.s32.totalorder %v106, 16
      %vm109 = vcmp.lt.s32.totalorder %v107, 16
      %vm110 = vcmp.gt.f32.partialorder %v69, 0.0
      %vm111 = vcmp.gt.f32.partialorder %v70, 0.0
      %vm112 = vmand %vm108, %vm110
      %vm113 = vmand %vm109, %vm111
      %v114 = vsub.f32 %v69, %v71
      %v115 = vsub.f32 %v70, %v72
      %v116 = vand.u32 2147483647, %v114
      %v117 = vand.u32 2147483647, %v115
      %v118 = vsel %vm112, %v116, 0.0
      %v119 = vsel %vm113, %v117, 0.0
      %v120 = vsel %vm112, 1, 0
      %v121 = vsel %vm113, 1, 0
      %v122 = vld [vmem:[#allocation7] sm:$0xff]
      %v123 = vadd.f32 %v118, %v119
      %v124 = vadd.f32 %v122, %v123
      %125 = vst [vmem:[#allocation7] sm:$0xff] %v124
      %v126 = vld [vmem:[#allocation8] sm:$0xff]
      %v127 = vadd.s32 %v120, %v121
      %v128 = vadd.s32 %v126, %v127
      %129 = vst [vmem:[#allocation8] sm:$0xff] %v128
    $region29: #{tpu_custom_call.1} parent=1 // pred_fallthru
      _
    // Predicated region
    $region30: #{tpu_custom_call.1} parent=1 // pred_check
      _
    $region31: #{tpu_custom_call.1} parent=1 // pred_check_branch
      %131 = sbr.rel (0) target = $region33
    $region32: #{tpu_custom_call.1} parent=1 // pred_region
      %s133 = ssub.s32 128, 128
      %134 = vsyncadd [#allocation4], %s133
      %s136 = sshll.u32 [#allocation7], 4
      %s137 = int_to_ptr.vmem [resolvable:$true] %s136
      %139 = dma.vmem_to_hbm [thread:$0]  %s137, 128, %s2, [#allocation4]
    $region33: #{tpu_custom_call.1} parent=1 // pred_fallthru
      _
    // Predicated region
    $region34: #{tpu_custom_call.1} parent=1 // pred_check
      _
    $region35: #{tpu_custom_call.1} parent=1 // pred_check_branch
      %141 = sbr.rel (0) target = $region37
    $region36: #{tpu_custom_call.1} parent=1 // pred_region
      %s143 = ssub.s32 128, 128
      %144 = vsyncadd [#allocation9], %s143
      %s146 = sshll.u32 [#allocation8], 4
      %s147 = int_to_ptr.vmem [resolvable:$true] %s146
      %149 = dma.vmem_to_hbm [thread:$0]  %s147, 128, %s3, [#allocation9]
    $region37: #{tpu_custom_call.1} parent=1 // pred_fallthru
      _
    // Predicated region
    $region38: #{tpu_custom_call.1} parent=1 // pred_check
      _
    $region39: #{tpu_custom_call.1} parent=1 // pred_check_branch
      %151 = sbr.rel (0) target = $region41
    $region40: #{tpu_custom_call.1} parent=1 // pred_region
      %152 = dma.done [#allocation4], 128
    $region41: #{tpu_custom_call.1} parent=1 // pred_fallthru
      _
    // Predicated region
    $region42: #{tpu_custom_call.1} parent=1 // pred_check
      _
    $region43: #{tpu_custom_call.1} parent=1 // pred_check_branch
      %154 = sbr.rel (0) target = $region45
    $region44: #{tpu_custom_call.1} parent=1 // pred_region
      %155 = dma.done [#allocation9], 128
    $region45: #{tpu_custom_call.1} parent=1 // pred_fallthru
      _
    %156 = vsyncpa [#allocation3], 1
    %157 = vsyncpa [#allocation6], 1
    %158 = vsyncpa [#allocation4], 1
    %159 = vsyncpa [#allocation9], 1

</llo_original>
